<compile_context>
chip_gen: v7x
topology: tpu7x:2x2x1
jax: 0.10.0
libtpu: 0.0.40
codegen_flags: <defaults>
</compile_context>

<pallas_src>
import functools

import jax
import jax.numpy as jnp
from jax import lax
from jax.experimental import pallas as pl
from jax.experimental.pallas import tpu as pltpu


# --------------------------------------------------------------------------
# helpers
# --------------------------------------------------------------------------
def _default_num_parallel():
    try:
        kind = jax.devices()[0].device_kind.lower()
    except Exception:
        return 1
    # Chips with two TensorCores per chip (v7x) / megacore benefit from the
    # leading "parallel" grid axis; single-TC chips (v5e, v6e) do not.
    return 2 if any(t in kind for t in ("v7", "v5p", "v4", "v3", "v2")) else 1


def _vmem_capacity_bytes():
    try:
        return int(pltpu.get_tpu_info().vmem_capacity_bytes)
    except Exception:
        return 64 * 1024 * 1024            # v7x-conservative fallback


def _choose_tile_rows(m_rows, row_lanes, preds_itemsize):
    """Packed-row tile sized off the chip's VMEM (double-buffered inputs)."""
    budget = min(16 * 1024 * 1024, _vmem_capacity_bytes() // 6)
    bytes_per_row = row_lanes * (preds_itemsize + 1)   # preds + int8 one-hot
    tile = budget // (2 * bytes_per_row)               # x2: double buffering
    tile = max(32, (tile // 32) * 32)                  # 32-row granule (all dtypes)
    tile = min(tile, 4096)                             # ~2 MiB useful f32 / step
    return int(m_rows) if tile >= m_rows else int(tile)


def _sanitize_tile_rows(tile_rows, m_rows):
    tile_rows = max(32, (int(tile_rows) // 32) * 32)
    return int(m_rows) if tile_rows >= m_rows else tile_rows


# --------------------------------------------------------------------------
# kernel
# --------------------------------------------------------------------------
def _f1_packed_kernel(preds_ref, onehot_ref, out_ref, *,
                      c_pad, m_rows, steps_per_core):
    core = pl.program_id(0)
    step = pl.program_id(1)

    @pl.when(step == 0)
    def _init():
        out_ref[...] = jnp.zeros_like(out_ref)

    x = preds_ref[...]                         # (tile_rows, row_lanes) native dtype
    rows, lanes = x.shape
    lane = lax.broadcasted_iota(jnp.int32, (rows, lanes), 1)
    cls = lane & (c_pad - 1)                   # class index within each sample group

    # ---- segmented (per-sample-group) max via XOR butterfly ---------------
    gmax = x
    s = 1
    while s < c_pad:
        lo = pltpu.roll(gmax, shift=lanes - s, axis=1)   # lane l <- lane l+s
        hi = pltpu.roll(gmax, shift=s, axis=1)           # lane l <- lane l-s
        gmax = jnp.maximum(gmax, jnp.where((lane & s) == 0, lo, hi))
        s *= 2

    # ---- first maximal class per group (torch.argmax tie-break) -----------
    cand = jnp.where(x == gmax, cls, jnp.int32(c_pad))
    amin = cand
    s = 1
    while s < c_pad:
        lo = pltpu.roll(amin, shift=lanes - s, axis=1)
        hi = pltpu.roll(amin, shift=s, axis=1)
        amin = jnp.minimum(amin, jnp.where((lane & s) == 0, lo, hi))
        s *= 2

    pred_oh = cls == amin                      # predicted one-hot, packed layout
    targ_oh = onehot_ref[...] != 0             # target one-hot, packed layout

    row0 = (core * steps_per_core + step) * rows   # virtual (unclamped) row start

    def _accumulate(p_oh, t_oh):
        i32 = jnp.int32
        out_ref[0, :] += jnp.sum((p_oh & t_oh).astype(i32), axis=0)   # tp
        out_ref[1, :] += jnp.sum(p_oh.astype(i32), axis=0)            # tp + fp
        out_ref[2, :] += jnp.sum(t_oh.astype(i32), axis=0)            # tp + fn

    @pl.when(row0 + rows <= m_rows)            # full interior block: no masking
    def _fast():
        _accumulate(pred_oh, targ_oh)

    @pl.when(row0 + rows > m_rows)             # ragged last block / clamped dup
    def _edge():
        ridx = row0 + lax.broadcasted_iota(jnp.int32, (rows, lanes), 0)
        valid = ridx < m_rows
        _accumulate(pred_oh & valid, targ_oh & valid)


# --------------------------------------------------------------------------
# wrapper
# --------------------------------------------------------------------------
def _tail_stats(preds_tail, targets_tail, num_classes):
    """Plain-JAX stats for the (< 128-sample) ragged tail."""
    lab = jnp.argmax(preds_tail, axis=1)
    classes = jnp.arange(num_classes, dtype=jnp.int32)
    pe = lab[:, None] == classes[None, :]
    te = targets_tail[:, None] == classes[None, :]
    i32 = jnp.int32
    return (jnp.sum((pe & te).astype(i32), axis=0),
            jnp.sum(pe.astype(i32), axis=0),
            jnp.sum(te.astype(i32), axis=0))


def f1_stats_pallas(preds, targets, num_classes, *, tile_rows=None, num_parallel=None):
    """Returns (tp, fp, fn, tn), each [num_classes] float32 (torch `stats`)."""
    n, c = preds.shape
    assert c == num_classes
    targets = targets.astype(jnp.int32)

    c_pad = max(int(pl.next_power_of_2(num_classes)), 1)
    g = max(1, 128 // c_pad)                 # samples packed per 128-lane row
    row_lanes = g * c_pad                    # 128 whenever c_pad <= 128
    n_bulk = (n // g) * g
    m_rows = n_bulk // g

    tp = jnp.zeros((num_classes,), jnp.int32)
    pred_hist = jnp.zeros((num_classes,), jnp.int32)
    targ_hist = jnp.zeros((num_classes,), jnp.int32)

    if m_rows > 0:
        preds_bulk = preds[:n_bulk]
        if c_pad != c:
            # TODO(synk): non-power-of-two num_classes costs one XLA pad pass.
            neg = float(jnp.finfo(preds.dtype).min)
            preds_bulk = jnp.pad(preds_bulk, ((0, 0), (0, c_pad - c)),
                                 constant_values=neg)
        # Zero-copy reshape when c == c_pad and n % g == 0.
        preds_packed = preds_bulk.reshape(m_rows, row_lanes)
        onehot_packed = (targets[:n_bulk, None] ==
                         jnp.arange(c_pad, dtype=jnp.int32)[None, :]
                         ).astype(jnp.int8).reshape(m_rows, row_lanes)

        if tile_rows is None:
            tile_rows = _choose_tile_rows(m_rows, row_lanes, preds.dtype.itemsize)
        else:
            tile_rows = _sanitize_tile_rows(tile_rows, m_rows)

        total_blocks = pl.cdiv(m_rows, tile_rows)
        if num_parallel is None:
            num_parallel = _default_num_parallel()
        num_parallel = max(1, min(int(num_parallel), total_blocks))
        steps_per_core = pl.cdiv(total_blocks, num_parallel)
        last_block = total_blocks - 1

        def in_map(core, step):
            # Clamp so the DMA never walks past the array; clamped duplicate
            # blocks are fully zeroed by the in-kernel validity mask.
            return (jnp.minimum(core * steps_per_core + step, last_block), 0)

        kernel = functools.partial(
            _f1_packed_kernel, c_pad=c_pad, m_rows=m_rows,
            steps_per_core=steps_per_core)

        partial_stats = pl.pallas_call(
            kernel,
            out_shape=jax.ShapeDtypeStruct((num_parallel, 3, row_lanes), jnp.int32),
            grid=(num_parallel, steps_per_core),
            in_specs=[
                pl.BlockSpec((tile_rows, row_lanes), in_map),   # packed preds
                pl.BlockSpec((tile_rows, row_lanes), in_map),   # packed int8 one-hot
            ],
            out_specs=pl.BlockSpec((None, 3, row_lanes),
                                   lambda core, step: (core, 0, 0)),
            compiler_params=pltpu.CompilerParams(
                dimension_semantics=("parallel", "arbitrary"),
                vmem_limit_bytes=32 * 1024 * 1024),
        )(preds_packed, onehot_packed)

        lane_stats = jnp.sum(partial_stats, axis=0)               # (3, row_lanes)
        cls_stats = lane_stats.reshape(3, g, c_pad).sum(axis=1)   # fold groups
        tp = tp + cls_stats[0, :num_classes]
        pred_hist = pred_hist + cls_stats[1, :num_classes]
        targ_hist = targ_hist + cls_stats[2, :num_classes]

    if n_bulk < n:
        t_tp, t_ph, t_th = _tail_stats(preds[n_bulk:], targets[n_bulk:], num_classes)
        tp = tp + t_tp
        pred_hist = pred_hist + t_ph
        targ_hist = targ_hist + t_th

    tp_f = tp.astype(jnp.float32)
    fp = pred_hist.astype(jnp.float32) - tp_f
    fn = targ_hist.astype(jnp.float32) - tp_f
    tn = jnp.float32(n) - tp_f - fp - fn
    return tp_f, fp, fn, tn


def f1_score(preds, targets, num_classes, *, tile_rows=None, num_parallel=None):
    """Mirror of torch F1Score.forward: scalar micro-F1 (float32)."""
    tp, fp, fn, _tn = f1_stats_pallas(preds, targets, num_classes,
                                      tile_rows=tile_rows, num_parallel=num_parallel)
    tp_s, fp_s, fn_s = jnp.sum(tp), jnp.sum(fp), jnp.sum(fn)
    precision = jnp.where(tp_s + fp_s > 0, tp_s / (tp_s + fp_s), 0.0)
    recall = jnp.where(tp_s + fn_s > 0, tp_s / (tp_s + fn_s), 0.0)
    denom = precision + recall
    # torch would emit NaN in the degenerate 0/0 case; we return 0.0.
    return jnp.where(denom > 0, 2.0 * precision * recall / denom, 0.0)


# --------------------------------------------------------------------------
# reference + demo
# --------------------------------------------------------------------------
def _f1_reference(preds, targets, num_classes):
    pred_lab = jnp.argmax(preds, axis=1)
    classes = jnp.arange(num_classes)
    pe = pred_lab[:, None] == classes[None, :]
    te = targets[:, None] == classes[None, :]
    tp = jnp.sum(pe & te, axis=0).astype(jnp.float32)
    fp = jnp.sum(pe & ~te, axis=0).astype(jnp.float32)
    fn = jnp.sum(~pe & te, axis=0).astype(jnp.float32)
    tn = jnp.sum(~pe & ~te, axis=0).astype(jnp.float32)
    tp_s, fp_s, fn_s = tp.sum(), fp.sum(), fn.sum()
    precision = tp_s / (tp_s + fp_s)
    recall = tp_s / (tp_s + fn_s)
    f1 = 2.0 * precision * recall / (precision + recall)
    return f1, (tp, fp, fn, tn)


if __name__ == "__main__":
    num_classes = 4
    key = jax.random.PRNGKey(0)
    k1, k2, k3, k4 = jax.random.split(key, 4)

    # Case 1: ragged N (plain-JAX tail + a tiny single packed row).
    n1 = 50
    preds1 = jax.random.normal(k1, (n1, num_classes), dtype=jnp.float32)
    targets1 = jax.random.randint(k2, (n1,), 0, num_classes, dtype=jnp.int32)

    out1 = jax.block_until_ready(f1_score(preds1, targets1, num_classes))
    stats1 = jax.block_until_ready(f1_stats_pallas(preds1, targets1, num_classes))
    ref1, ref_stats1 = _f1_reference(preds1, targets1, num_classes)
    for got, want in zip(stats1, ref_stats1):
        assert jnp.allclose(got, want), (got, want)
    assert jnp.allclose(out1, ref1, atol=1e-6), (out1, ref1)

    # Case 2: multi-block grid exercising the "parallel" axis, cross-step
    # accumulation, a ragged last block, a clamped (fully masked) duplicate
    # block and a small sample tail.
    n2 = 5000
    preds2 = jax.random.normal(k3, (n2, num_classes), dtype=jnp.float32)
    targets2 = jax.random.randint(k4, (n2,), 0, num_classes, dtype=jnp.int32)

    out2 = jax.block_until_ready(
        f1_score(preds2, targets2, num_classes, tile_rows=32, num_parallel=2))
    stats2 = jax.block_until_ready(
        f1_stats_pallas(preds2, targets2, num_classes, tile_rows=32, num_parallel=2))
    ref2, ref_stats2 = _f1_reference(preds2, targets2, num_classes)
    for got, want in zip(stats2, ref_stats2):
        assert jnp.allclose(got, want), (got, want)
    assert jnp.allclose(out2, ref2, atol=1e-6), (out2, ref2)

    print("KERNEL_OK")
</pallas_src>

<mosaic_0001>
module attributes {stable_mosaic.version = 11 : i64} {
  func.func @_f1_packed_kernel(%arg0: i32, %arg1: i32, %arg2: memref<1x128xf32, #tpu.memory_space<vmem>>, %arg3: memref<1x128xi8, #tpu.memory_space<vmem>>, %arg4: memref<1x3x128xi32, #tpu.memory_space<vmem>>) attributes {dimension_semantics = [#tpu.dimension_semantics<parallel>, #tpu.dimension_semantics<arbitrary>], iteration_bounds = array<i64: 1, 1>, scalar_prefetch = 0 : i64, scratch_operands = 0 : i64, tpu.core_type = #tpu.core_type<tc>, window_params = [{transform_indices = @transform_0, window_bounds = array<i64: 1, 128>}, {transform_indices = @transform_1, window_bounds = array<i64: 1, 128>}, {transform_indices = @transform_2, window_bounds = array<i64: 1, 3, 128>}]} {
    %c0_i32 = arith.constant 0 : i32
    %0 = arith.cmpi eq, %arg1, %c0_i32 : i32
    %1 = arith.extui %0 : i1 to i32
    %c0_i32_0 = arith.constant 0 : i32
    %2 = arith.cmpi ne, %1, %c0_i32_0 : i32
    scf.if %2 {
      %c0_i32_24 = arith.constant 0 : i32
      %57 = vector.broadcast %c0_i32_24 : i32 to vector<3x128xi32>
      %c0_25 = arith.constant 0 : index
      %c0_26 = arith.constant 0 : index
      %c0_27 = arith.constant 0 : index
      %58 = vector.load %arg4[%c0_25, %c0_26, %c0_27] : memref<1x3x128xi32, #tpu.memory_space<vmem>>, vector<1x3x128xi32>
      %59 = vector.shape_cast %58 : vector<1x3x128xi32> to vector<3x128xi32>
      %60 = vector.shape_cast %57 : vector<3x128xi32> to vector<1x3x128xi32>
      tpu.vector_store %arg4[%c0_25, %c0_26, %c0_27], %60 {strides = array<i32>} : memref<1x3x128xi32, #tpu.memory_space<vmem>>, vector<1x3x128xi32>,
    } else {
    }
    %c0 = arith.constant 0 : index
    %c0_1 = arith.constant 0 : index
    %3 = vector.load %arg2[%c0, %c0_1] : memref<1x128xf32, #tpu.memory_space<vmem>>, vector<1x128xf32>
    %4 = tpu.iota {dimensions = array<i32: 1>} : vector<1x128xi32>
    %c3_i32 = arith.constant 3 : i32
    %5 = vector.broadcast %c3_i32 : i32 to vector<1x128xi32>
    %6 = arith.andi %4, %5 : vector<1x128xi32>
    %c127_i32 = arith.constant 127 : i32
    %7 = tpu.dynamic_rotate %3 by %c127_i32 dim 1 : vector<1x128xf32>, i32 -> vector<1x128xf32>
    %c1_i32 = arith.constant 1 : i32
    %8 = tpu.dynamic_rotate %3 by %c1_i32 dim 1 : vector<1x128xf32>, i32 -> vector<1x128xf32>
    %c1_i32_2 = arith.constant 1 : i32
    %9 = vector.broadcast %c1_i32_2 : i32 to vector<1x128xi32>
    %10 = arith.andi %4, %9 : vector<1x128xi32>
    %c0_i32_3 = arith.constant 0 : i32
    %11 = vector.broadcast %c0_i32_3 : i32 to vector<1x128xi32>
    %12 = arith.cmpi eq, %10, %11 : vector<1x128xi32>
    %13 = arith.select %12, %7, %8 : vector<1x128xi1>, vector<1x128xf32>
    %14 = arith.maximumf %3, %13 : vector<1x128xf32>
    %c126_i32 = arith.constant 126 : i32
    %15 = tpu.dynamic_rotate %14 by %c126_i32 dim 1 : vector<1x128xf32>, i32 -> vector<1x128xf32>
    %c2_i32 = arith.constant 2 : i32
    %16 = tpu.dynamic_rotate %14 by %c2_i32 dim 1 : vector<1x128xf32>, i32 -> vector<1x128xf32>
    %c2_i32_4 = arith.constant 2 : i32
    %17 = vector.broadcast %c2_i32_4 : i32 to vector<1x128xi32>
    %18 = arith.andi %4, %17 : vector<1x128xi32>
    %c0_i32_5 = arith.constant 0 : i32
    %19 = vector.broadcast %c0_i32_5 : i32 to vector<1x128xi32>
    %20 = arith.cmpi eq, %18, %19 : vector<1x128xi32>
    %21 = arith.select %20, %15, %16 : vector<1x128xi1>, vector<1x128xf32>
    %22 = arith.maximumf %14, %21 : vector<1x128xf32>
    %23 = arith.cmpf oeq, %3, %22 : vector<1x128xf32>
    %c4_i32 = arith.constant 4 : i32
    %24 = vector.broadcast %c4_i32 : i32 to vector<1x128xi32>
    %25 = arith.select %23, %6, %24 : vector<1x128xi1>, vector<1x128xi32>
    %c127_i32_6 = arith.constant 127 : i32
    %26 = tpu.dynamic_rotate %25 by %c127_i32_6 dim 1 : vector<1x128xi32>, i32 -> vector<1x128xi32>
    %c1_i32_7 = arith.constant 1 : i32
    %27 = tpu.dynamic_rotate %25 by %c1_i32_7 dim 1 : vector<1x128xi32>, i32 -> vector<1x128xi32>
    %c1_i32_8 = arith.constant 1 : i32
    %28 = vector.broadcast %c1_i32_8 : i32 to vector<1x128xi32>
    %29 = arith.andi %4, %28 : vector<1x128xi32>
    %c0_i32_9 = arith.constant 0 : i32
    %30 = vector.broadcast %c0_i32_9 : i32 to vector<1x128xi32>
    %31 = arith.cmpi eq, %29, %30 : vector<1x128xi32>
    %32 = arith.select %31, %26, %27 : vector<1x128xi1>, vector<1x128xi32>
    %33 = arith.minsi %25, %32 : vector<1x128xi32>
    %c126_i32_10 = arith.constant 126 : i32
    %34 = tpu.dynamic_rotate %33 by %c126_i32_10 dim 1 : vector<1x128xi32>, i32 -> vector<1x128xi32>
    %c2_i32_11 = arith.constant 2 : i32
    %35 = tpu.dynamic_rotate %33 by %c2_i32_11 dim 1 : vector<1x128xi32>, i32 -> vector<1x128xi32>
    %c2_i32_12 = arith.constant 2 : i32
    %36 = vector.broadcast %c2_i32_12 : i32 to vector<1x128xi32>
    %37 = arith.andi %4, %36 : vector<1x128xi32>
    %c0_i32_13 = arith.constant 0 : i32
    %38 = vector.broadcast %c0_i32_13 : i32 to vector<1x128xi32>
    %39 = arith.cmpi eq, %37, %38 : vector<1x128xi32>
    %40 = arith.select %39, %34, %35 : vector<1x128xi1>, vector<1x128xi32>
    %41 = arith.minsi %33, %40 : vector<1x128xi32>
    %42 = arith.cmpi eq, %6, %41 : vector<1x128xi32>
    %c0_14 = arith.constant 0 : index
    %c0_15 = arith.constant 0 : index
    %43 = vector.load %arg3[%c0_14, %c0_15] : memref<1x128xi8, #tpu.memory_space<vmem>>, vector<1x128xi8>
    %c0_i8 = arith.constant 0 : i8
    %44 = vector.broadcast %c0_i8 : i8 to vector<1x128xi8>
    %45 = arith.cmpi ne, %43, %44 : vector<1x128xi8>
    %c1_i32_16 = arith.constant 1 : i32
    %46 = arith.muli %arg0, %c1_i32_16 : i32
    %47 = arith.addi %46, %arg1 : i32
    %c1_i32_17 = arith.constant 1 : i32
    %48 = arith.muli %47, %c1_i32_17 : i32
    %c1_i32_18 = arith.constant 1 : i32
    %49 = arith.addi %48, %c1_i32_18 : i32
    %c1_i32_19 = arith.constant 1 : i32
    %50 = arith.cmpi sle, %49, %c1_i32_19 : i32
    %51 = arith.extui %50 : i1 to i32
    %c0_i32_20 = arith.constant 0 : i32
    %52 = arith.cmpi ne, %51, %c0_i32_20 : i32
    scf.if %52 {
      %c0_24 = arith.constant 0 : index
      %c0_25 = arith.constant 0 : index
      %c0_26 = arith.constant 0 : index
      %57 = vector.load %arg4[%c0_24, %c0_25, %c0_26] : memref<1x3x128xi32, #tpu.memory_space<vmem>>, vector<1x1x128xi32>
      %58 = vector.shape_cast %57 : vector<1x1x128xi32> to vector<128xi32>
      %59 = arith.andi %42, %45 : vector<1x128xi1>
      %60 = arith.extui %59 : vector<1x128xi1> to vector<1x128xi32>
      %cst = arith.constant dense<0> : vector<128xi32>
      %61 = vector.multi_reduction <add>, %60, %cst [0] : vector<1x128xi32> to vector<128xi32>
      %62 = arith.addi %58, %61 : vector<128xi32>
      %c0_27 = arith.constant 0 : index
      %c0_28 = arith.constant 0 : index
      %c0_29 = arith.constant 0 : index
      %63 = vector.load %arg4[%c0_27, %c0_28, %c0_29] : memref<1x3x128xi32, #tpu.memory_space<vmem>>, vector<1x1x128xi32>
      %64 = vector.shape_cast %63 : vector<1x1x128xi32> to vector<128xi32>
      %65 = vector.shape_cast %62 : vector<128xi32> to vector<1x1x128xi32>
      tpu.vector_store %arg4[%c0_27, %c0_28, %c0_29], %65 {strides = array<i32>} : memref<1x3x128xi32, #tpu.memory_space<vmem>>, vector<1x1x128xi32>,
      %c0_30 = arith.constant 0 : index
      %c1 = arith.constant 1 : index
      %c0_31 = arith.constant 0 : index
      %66 = vector.load %arg4[%c0_30, %c1, %c0_31] : memref<1x3x128xi32, #tpu.memory_space<vmem>>, vector<1x1x128xi32>
      %67 = vector.shape_cast %66 : vector<1x1x128xi32> to vector<128xi32>
      %68 = arith.extui %42 : vector<1x128xi1> to vector<1x128xi32>
      %cst_32 = arith.constant dense<0> : vector<128xi32>
      %69 = vector.multi_reduction <add>, %68, %cst_32 [0] : vector<1x128xi32> to vector<128xi32>
      %70 = arith.addi %67, %69 : vector<128xi32>
      %c0_33 = arith.constant 0 : index
      %c1_34 = arith.constant 1 : index
      %c0_35 = arith.constant 0 : index
      %71 = vector.load %arg4[%c0_33, %c1_34, %c0_35] : memref<1x3x128xi32, #tpu.memory_space<vmem>>, vector<1x1x128xi32>
      %72 = vector.shape_cast %71 : vector<1x1x128xi32> to vector<128xi32>
      %73 = vector.shape_cast %70 : vector<128xi32> to vector<1x1x128xi32>
      tpu.vector_store %arg4[%c0_33, %c1_34, %c0_35], %73 {strides = array<i32>} : memref<1x3x128xi32, #tpu.memory_space<vmem>>, vector<1x1x128xi32>,
      %c0_36 = arith.constant 0 : index
      %c2 = arith.constant 2 : index
      %c0_37 = arith.constant 0 : index
      %74 = vector.load %arg4[%c0_36, %c2, %c0_37] : memref<1x3x128xi32, #tpu.memory_space<vmem>>, vector<1x1x128xi32>
      %75 = vector.shape_cast %74 : vector<1x1x128xi32> to vector<128xi32>
      %76 = arith.extui %45 : vector<1x128xi1> to vector<1x128xi32>
      %cst_38 = arith.constant dense<0> : vector<128xi32>
      %77 = vector.multi_reduction <add>, %76, %cst_38 [0] : vector<1x128xi32> to vector<128xi32>
      %78 = arith.addi %75, %77 : vector<128xi32>
      %c0_39 = arith.constant 0 : index
      %c2_40 = arith.constant 2 : index
      %c0_41 = arith.constant 0 : index
      %79 = vector.load %arg4[%c0_39, %c2_40, %c0_41] : memref<1x3x128xi32, #tpu.memory_space<vmem>>, vector<1x1x128xi32>
      %80 = vector.shape_cast %79 : vector<1x1x128xi32> to vector<128xi32>
      %81 = vector.shape_cast %78 : vector<128xi32> to vector<1x1x128xi32>
      tpu.vector_store %arg4[%c0_39, %c2_40, %c0_41], %81 {strides = array<i32>} : memref<1x3x128xi32, #tpu.memory_space<vmem>>, vector<1x1x128xi32>,
    } else {
    }
    %c1_i32_21 = arith.constant 1 : i32
    %53 = arith.addi %48, %c1_i32_21 : i32
    %c1_i32_22 = arith.constant 1 : i32
    %54 = arith.cmpi sgt, %53, %c1_i32_22 : i32
    %55 = arith.extui %54 : i1 to i32
    %c0_i32_23 = arith.constant 0 : i32
    %56 = arith.cmpi ne, %55, %c0_i32_23 : i32
    scf.if %56 {
      %57 = tpu.iota {dimensions = array<i32: 0>} : vector<1x128xi32>
      %58 = vector.broadcast %48 : i32 to vector<1x128xi32>
      %59 = arith.addi %58, %57 : vector<1x128xi32>
      %c1_i32_24 = arith.constant 1 : i32
      %60 = vector.broadcast %c1_i32_24 : i32 to vector<1x128xi32>
      %61 = arith.cmpi slt, %59, %60 : vector<1x128xi32>
      %62 = arith.andi %42, %61 : vector<1x128xi1>
      %63 = arith.andi %45, %61 : vector<1x128xi1>
      %c0_25 = arith.constant 0 : index
      %c0_26 = arith.constant 0 : index
      %c0_27 = arith.constant 0 : index
      %64 = vector.load %arg4[%c0_25, %c0_26, %c0_27] : memref<1x3x128xi32, #tpu.memory_space<vmem>>, vector<1x1x128xi32>
      %65 = vector.shape_cast %64 : vector<1x1x128xi32> to vector<128xi32>
      %66 = arith.andi %62, %63 : vector<1x128xi1>
      %67 = arith.extui %66 : vector<1x128xi1> to vector<1x128xi32>
      %cst = arith.constant dense<0> : vector<128xi32>
      %68 = vector.multi_reduction <add>, %67, %cst [0] : vector<1x128xi32> to vector<128xi32>
      %69 = arith.addi %65, %68 : vector<128xi32>
      %c0_28 = arith.constant 0 : index
      %c0_29 = arith.constant 0 : index
      %c0_30 = arith.constant 0 : index
      %70 = vector.load %arg4[%c0_28, %c0_29, %c0_30] : memref<1x3x128xi32, #tpu.memory_space<vmem>>, vector<1x1x128xi32>
      %71 = vector.shape_cast %70 : vector<1x1x128xi32> to vector<128xi32>
      %72 = vector.shape_cast %69 : vector<128xi32> to vector<1x1x128xi32>
      tpu.vector_store %arg4[%c0_28, %c0_29, %c0_30], %72 {strides = array<i32>} : memref<1x3x128xi32, #tpu.memory_space<vmem>>, vector<1x1x128xi32>,
      %c0_31 = arith.constant 0 : index
      %c1 = arith.constant 1 : index
      %c0_32 = arith.constant 0 : index
      %73 = vector.load %arg4[%c0_31, %c1, %c0_32] : memref<1x3x128xi32, #tpu.memory_space<vmem>>, vector<1x1x128xi32>
      %74 = vector.shape_cast %73 : vector<1x1x128xi32> to vector<128xi32>
      %75 = arith.extui %62 : vector<1x128xi1> to vector<1x128xi32>
      %cst_33 = arith.constant dense<0> : vector<128xi32>
      %76 = vector.multi_reduction <add>, %75, %cst_33 [0] : vector<1x128xi32> to vector<128xi32>
      %77 = arith.addi %74, %76 : vector<128xi32>
      %c0_34 = arith.constant 0 : index
      %c1_35 = arith.constant 1 : index
      %c0_36 = arith.constant 0 : index
      %78 = vector.load %arg4[%c0_34, %c1_35, %c0_36] : memref<1x3x128xi32, #tpu.memory_space<vmem>>, vector<1x1x128xi32>
      %79 = vector.shape_cast %78 : vector<1x1x128xi32> to vector<128xi32>
      %80 = vector.shape_cast %77 : vector<128xi32> to vector<1x1x128xi32>
      tpu.vector_store %arg4[%c0_34, %c1_35, %c0_36], %80 {strides = array<i32>} : memref<1x3x128xi32, #tpu.memory_space<vmem>>, vector<1x1x128xi32>,
      %c0_37 = arith.constant 0 : index
      %c2 = arith.constant 2 : index
      %c0_38 = arith.constant 0 : index
      %81 = vector.load %arg4[%c0_37, %c2, %c0_38] : memref<1x3x128xi32, #tpu.memory_space<vmem>>, vector<1x1x128xi32>
      %82 = vector.shape_cast %81 : vector<1x1x128xi32> to vector<128xi32>
      %83 = arith.extui %63 : vector<1x128xi1> to vector<1x128xi32>
      %cst_39 = arith.constant dense<0> : vector<128xi32>
      %84 = vector.multi_reduction <add>, %83, %cst_39 [0] : vector<1x128xi32> to vector<128xi32>
      %85 = arith.addi %82, %84 : vector<128xi32>
      %c0_40 = arith.constant 0 : index
      %c2_41 = arith.constant 2 : index
      %c0_42 = arith.constant 0 : index
      %86 = vector.load %arg4[%c0_40, %c2_41, %c0_42] : memref<1x3x128xi32, #tpu.memory_space<vmem>>, vector<1x1x128xi32>
      %87 = vector.shape_cast %86 : vector<1x1x128xi32> to vector<128xi32>
      %88 = vector.shape_cast %85 : vector<128xi32> to vector<1x1x128xi32>
      tpu.vector_store %arg4[%c0_40, %c2_41, %c0_42], %88 {strides = array<i32>} : memref<1x3x128xi32, #tpu.memory_space<vmem>>, vector<1x1x128xi32>,
    } else {
    }
    return
  }
  func.func @transform_0(%arg0: i32, %arg1: i32) -> (i32, i32) {
    %c1_i32 = arith.constant 1 : i32
    %0 = arith.muli %arg0, %c1_i32 : i32
    %1 = arith.addi %0, %arg1 : i32
    %c0_i32 = arith.constant 0 : i32
    %2 = arith.minsi %1, %c0_i32 : i32
    %c0_i32_0 = arith.constant 0 : i32
    %c0_i32_1 = arith.constant 0 : i32
    return %2, %c0_i32_0 : i32, i32
  }
  func.func @transform_1(%arg0: i32, %arg1: i32) -> (i32, i32) {
    %c1_i32 = arith.constant 1 : i32
    %0 = arith.muli %arg0, %c1_i32 : i32
    %1 = arith.addi %0, %arg1 : i32
    %c0_i32 = arith.constant 0 : i32
    %2 = arith.minsi %1, %c0_i32 : i32
    %c0_i32_0 = arith.constant 0 : i32
    %c0_i32_1 = arith.constant 0 : i32
    return %2, %c0_i32_0 : i32, i32
  }
  func.func @transform_2(%arg0: i32, %arg1: i32) -> (i32, i32, i32) {
    %c0_i32 = arith.constant 0 : i32
    %c0_i32_0 = arith.constant 0 : i32
    %c0_i32_1 = arith.constant 0 : i32
    return %arg0, %c0_i32, %c0_i32_0 : i32, i32, i32
  }
}

</mosaic_0001>

<llo_original>
// kernel: tpu_custom_call.1
$region0: #{tpu_custom_call.1}
  #allocation0 [shape = 'u32[]', space=smem, size = 0x4, offset = 0x4, fixed_abs, tag = 'smem constant byte address 0x4 - core index']
  #allocation1 [shape = 'u32[144,128]{1,0:T(1,128)}', space=vmem, size = 0x12000, scoped, tag = 'internal scratch']
  %s0 = inlined_call_operand.hbm [shape: f32[1,128], index: 0, kind: input, shape index: {}]
  %s1 = inlined_call_operand.vmem [shape: s8[1,128], index: 1, kind: input, shape index: {}]
  %s2 = inlined_call_operand.vmem [shape: s32[1,3,128], index: 2, kind: output, shape index: {}]
  %s3 = sld [smem:[#allocation0]]
  $region34: #{tpu_custom_call.1} parent=0
    _
  %s5 = ssub.s32 1, %s3
  %s6 = scalar_select 0, %s5, %s3
  $region1: #{tpu_custom_call.1} parent=0
    #allocation2 [shape = 'u8[512]{0}', space=vmem, size = 0x400, scoped, tag = 'input window, operand 0, single buffered']
    #allocation3 [shape = 's32[1]{0}', space=sflag, size = 0x4, scoped, tag = 'scoped memory for tpu_custom_call.1']
    %7 = vsyncpa [#allocation3], 0
    // Predicated region
    $region2: #{tpu_custom_call.1} parent=1 // pred_check
      _
    $region3: #{tpu_custom_call.1} parent=1 // pred_check_branch
      %9 = sbr.rel (0) target = $region5
    $region4: #{tpu_custom_call.1} parent=1 // pred_region
      %s10 = sadd.s32 0, 0
      %p11 = scmp.lt.s32.totalorder %s10, 0
      %s12 = scalar_select %p11, %s10, 0
      %s14 = ssub.s32 16, 16
      %15 = vsyncadd [#allocation3], %s14
      %s16 = smul.addr %s12, 16
      %s17 = scalar_lea.hbm %s0, %s16
      %s19 = sshll.u32 [#allocation2], 4
      %s20 = int_to_ptr.vmem [resolvable:$true] %s19
      %22 = dma.hbm_to_vmem [thread:$0]  %s17, 16, %s20, [#allocation3]
    $region5: #{tpu_custom_call.1} parent=1 // pred_fallthru
      _
    // Predicated region
    $region6: #{tpu_custom_call.1} parent=1 // pred_check
      _
    $region7: #{tpu_custom_call.1} parent=1 // pred_check_branch
      %24 = sbr.rel (0) target = $region9
    $region8: #{tpu_custom_call.1} parent=1 // pred_region
      %s25 = sadd.s32 0, 0
      %p26 = scmp.lt.s32.totalorder %s25, 0
      %s27 = scalar_select %p26, %s25, 0
      %p28 = scmp.lt.s32.totalorder %s27, 0
      %s29 = scalar_select %p28, %s27, 0
      %s30 = scalar_lea.vmem %s1, %s29
      %s31 = sadd.s32 0, 0
      %p32 = scmp.lt.s32.totalorder %s31, 0
      %s33 = scalar_select %p32, %s31, 0
    $region9: #{tpu_custom_call.1} parent=1 // pred_fallthru
      _
    // Predicated region
    $region10: #{tpu_custom_call.1} parent=1 // pred_check
      _
    $region11: #{tpu_custom_call.1} parent=1 // pred_check_branch
      %35 = sbr.rel (0) target = $region13
    $region12: #{tpu_custom_call.1} parent=1 // pred_region
      %36 = dma.done [#allocation3], 16
    $region13: #{tpu_custom_call.1} parent=1 // pred_fallthru
      _
    %s37 = sadd.s32 0, 0
    %p38 = scmp.lt.s32.totalorder %s37, 0
    %s39 = scalar_select %p38, %s37, 0
    %p40 = scmp.lt.s32.totalorder %s39, 0
    %s41 = scalar_select %p40, %s39, 0
    %s42 = scalar_lea.vmem %s1, %s41
    %s43 = sadd.s32 0, 0
    %p44 = scmp.lt.s32.totalorder %s43, 0
    %s45 = scalar_select %p44, %s43, 0
    %s46 = sadd.s32 0, 0
    %p47 = scmp.lt.s32.totalorder %s46, 0
    %s48 = scalar_select %p47, %s46, 0
    %p49 = scmp.lt.s32.totalorder %s48, 0
    %s50 = scalar_select %p49, %s48, 0
    %s51 = scalar_lea.vmem %s1, %s50
    %s52 = sadd.s32 0, 0
    %p53 = scmp.lt.s32.totalorder %s52, 0
    %s54 = scalar_select %p53, %s52, 0
    %p57 = scmp.eq.s32.totalorder 0, 0
    // Predicated region
    $region14: #{tpu_custom_call.1} parent=1 // pred_check
      %p58 = pneg %p57
    $region15: #{tpu_custom_call.1} parent=1 // pred_check_branch
      %60 = sbr.rel (%p58) target = $region17
    $region16: #{tpu_custom_call.1} parent=1 // pred_region
      %61 = vst [vmem:[%s2] sm:$0x7] 0
    $region17: #{tpu_custom_call.1} parent=1 // pred_fallthru
      _
    %v62 = vld [vmem:[#allocation2] sm:$0x1]
    %v63 = vlaneseq
    %v64 = vand.u32 %v63, 127
    %v65 = vand.u32 %v64, 3
    %66 = vrot.lane.b32.xlu0 %v62, 127
    %v67 = vpop.permute.xlu0 %66
    %68 = vrot.lane.b32.xlu0 %v62, 1
    %v69 = vpop.permute.xlu0 %68
    %v70 = vand.u32 %v64, 1
    %vm71 = vcmp.eq.s32.totalorder %v70, 0
    %v72 = vsel %vm71, %v67, %v69
    %v73 = vmax.f32 %v62, %v72
    %74 = vrot.lane.b32.xlu0 %v73, 126
    %v75 = vpop.permute.xlu0 %74
    %76 = vrot.lane.b32.xlu0 %v73, 2
    %v77 = vpop.permute.xlu0 %76
    %v78 = vand.u32 %v64, 2
    %vm79 = vcmp.eq.s32.totalorder %v78, 0
    %v80 = vsel %vm79, %v75, %v77
    %v81 = vmax.f32 %v73, %v80
    %vm82 = vcmp.eq.f32.partialorder %v62, %v81
    %v83 = vsel %vm82, %v65, 4
    %84 = vrot.lane.b32.xlu0 %v83, 127
    %v85 = vpop.permute.xlu0 %84
    %86 = vrot.lane.b32.xlu0 %v83, 1
    %v87 = vpop.permute.xlu0 %86
    %v88 = vsel %vm71, %v85, %v87
    %vm89 = vcmp.lt.s32.totalorder %v83, %v88
    %v90 = vsel %vm89, %v83, %v88
    %91 = vrot.lane.b32.xlu0 %v90, 126
    %v92 = vpop.permute.xlu0 %91
    %93 = vrot.lane.b32.xlu0 %v90, 2
    %v94 = vpop.permute.xlu0 %93
    %v95 = vsel %vm79, %v92, %v94
    %vm96 = vcmp.lt.s32.totalorder %v90, %v95
    %v97 = vsel %vm96, %v90, %v95
    %vm98 = vcmp.eq.s32.totalorder %v65, %v97
    %v99 = vld [vmem:[%s51] sm:$0x1]
    %vm100 = vnez %v99
    %s101 = sadd.s32 0, 0
    %s102 = sadd.s32 %s101, 1
    %p103 = scmp.le.s32.totalorder %s102, 1
    // Predicated region
    $region18: #{tpu_custom_call.1} parent=1 // pred_check
      %p104 = pneg %p103
    $region19: #{tpu_custom_call.1} parent=1 // pred_check_branch
      %106 = sbr.rel (%p104) target = $region21
    $region20: #{tpu_custom_call.1} parent=1 // pred_region
      %v107 = vld [vmem:[%s2] sm:$0x1]
      %v108 = vsel %vm100, 16843009, 0
      %v109 = vunpack.c.0.s8 %v108
      %vm110 = vcmp.ne.s32.totalorder %v109, 0
      %vm111 = vmand %vm98, %vm110
      %v112 = vsel %vm111, 1, 0
      %v113 = vadd.s32 %v107, %v112
      %114 = vst [vmem:[%s2] sm:$0x1] %v113
      %v115 = vld [vmem:[%s2 + $0x1] sm:$0x1]
      %v116 = vsel %vm98, 1, 0
      %v117 = vadd.s32 %v115, %v116
      %118 = vst [vmem:[%s2 + $0x1] sm:$0x1] %v117
      %v119 = vld [vmem:[%s2 + $0x2] sm:$0x1]
      %v120 = vsel %vm110, 1, 0
      %v121 = vadd.s32 %v119, %v120
      %122 = vst [vmem:[%s2 + $0x2] sm:$0x1] %v121
    $region21: #{tpu_custom_call.1} parent=1 // pred_fallthru
      _
    %p123 = scmp.gt.s32.totalorder %s102, 1
    // Predicated region
    $region22: #{tpu_custom_call.1} parent=1 // pred_check
      %p124 = pneg %p123
    $region23: #{tpu_custom_call.1} parent=1 // pred_check_branch
      %126 = sbr.rel (%p124) target = $region25
    $region24: #{tpu_custom_call.1} parent=1 // pred_region
      %v127 = vlaneseq
      %v128 = vshrl.u32 %v127, 7
      %v129 = vstv %s101
      %v130 = vadd.s32 %v129, %v128
      %vm131 = vcmp.lt.s32.totalorder %v130, 1
      %vm132 = vmand %vm98, %vm131
      %v133 = vsel %vm131, 1, 0
      %v134 = vpack.c.b16 %v133, %v133
      %v135 = vpack.c.b8 %v134, %v134
      %vm136 = vnez %v135
      %vm137 = vmand %vm100, %vm136
      %v138 = vld [vmem:[%s2] sm:$0x1]
      %v139 = vsel %vm137, 16843009, 0
      %v140 = vunpack.c.0.s8 %v139
      %vm141 = vcmp.ne.s32.totalorder %v140, 0
      %vm142 = vmand %vm132, %vm141
      %v143 = vsel %vm142, 1, 0
      %v144 = vadd.s32 %v138, %v143
      %145 = vst [vmem:[%s2] sm:$0x1] %v144
      %v146 = vld [vmem:[%s2 + $0x1] sm:$0x1]
      %v147 = vsel %vm132, 1, 0
      %v148 = vadd.s32 %v146, %v147
      %149 = vst [vmem:[%s2 + $0x1] sm:$0x1] %v148
      %v150 = vld [vmem:[%s2 + $0x2] sm:$0x1]
      %v151 = vsel %vm141, 1, 0
      %v152 = vadd.s32 %v150, %v151
      %153 = vst [vmem:[%s2 + $0x2] sm:$0x1] %v152
    $region25: #{tpu_custom_call.1} parent=1 // pred_fallthru
      _
    // Predicated region
    $region26: #{tpu_custom_call.1} parent=1 // pred_check
      _
    $region27: #{tpu_custom_call.1} parent=1 // pred_check_branch
      %155 = sbr.rel (0) target = $region29
    $region28: #{tpu_custom_call.1} parent=1 // pred_region
      _
    $region29: #{tpu_custom_call.1} parent=1 // pred_fallthru
      _
    // Predicated region
    $region30: #{tpu_custom_call.1} parent=1 // pred_check
      _
    $region31: #{tpu_custom_call.1} parent=1 // pred_check_branch
      %157 = sbr.rel (0) target = $region33
    $region32: #{tpu_custom_call.1} parent=1 // pred_region
      _
    $region33: #{tpu_custom_call.1} parent=1 // pred_fallthru
      _
    %158 = vsyncpa [#allocation3], 1

</llo_original>
